<compile_context>
chip_gen: v5e
topology: v5e:2x2
jax: 0.10.0
libtpu: 0.0.40
codegen_flags: <defaults>
</compile_context>

<pallas_src>
import functools
import math

import jax
import jax.numpy as jnp
import numpy as np
from jax.experimental import pallas as pl
from jax.experimental.pallas import tpu as pltpu

BLOCK = 8
TRUNCATE = 250  # hard-coded in the PyTorch sampling loop

# JPEG zigzag order exactly as listed in the PyTorch module (row, col).
_ZIGZAG_LOC = [
    (0, 0), (0, 1), (1, 0), (2, 0), (1, 1), (0, 2), (0, 3), (1, 2),
    (2, 1), (3, 0), (4, 0), (3, 1), (2, 2), (1, 3), (0, 4), (0, 5),
    (1, 4), (2, 3), (3, 2), (4, 1), (5, 0), (6, 0), (5, 1), (4, 2),
    (3, 3), (2, 4), (1, 5), (0, 6), (0, 7), (1, 6), (2, 5), (3, 4),
    (4, 3), (5, 2), (6, 1), (7, 0), (7, 1), (6, 2), (5, 3), (4, 4),
    (3, 5), (2, 6), (1, 7), (2, 7), (3, 6), (4, 5), (5, 4), (6, 3),
    (7, 2), (7, 3), (6, 4), (5, 5), (4, 6), (3, 7), (4, 7), (5, 6),
    (6, 5), (7, 4), (7, 5), (6, 6), (5, 7), (6, 7), (7, 6), (7, 7),
]


def make_dct_matrix(block_size: int = BLOCK) -> np.ndarray:
    """Q matrix exactly as built in Sampled_DCT2.__init__ (float32)."""
    Q = np.zeros((block_size, block_size), dtype=np.float32)
    Q[0, :] = math.sqrt(1.0 / float(block_size))
    for i in range(1, block_size):
        for j in range(block_size):
            Q[i, j] = math.sqrt(2.0 / float(block_size)) * math.cos(
                float((2 * j + 1) * math.pi * i) / float(2.0 * block_size))
    return Q


def _pick_tile(dim: int, align: int, target: int) -> int:
    """Largest multiple of `align` dividing `dim` that is <= target.

    Falls back to the full extent (always legal: block == full array dim)."""
    best = None
    t = align
    limit = min(dim, target)
    while t <= limit:
        if dim % t == 0:
            best = t
        t += align
    return best if best is not None else dim


def _default_tw_target() -> int:
    """MXU-width-aware column-tile target: 256 on v6e/v7x, 128 on v5e/older.

    The second matmul contracts over TW; keeping TW at (or under) the MXU
    contraction width avoids extra K-passes of pure kron waste."""
    try:
        kind = jax.devices()[0].device_kind.lower()
    except Exception:
        return 128
    if ("v6" in kind) or ("v7" in kind) or ("7x" in kind):
        return 256
    return 128


def _dct_kernel(x_ref, qh_ref, qwt_ref, o_ref, *, weights):
    # x_ref : (1, Cb, TH, TW) tile of the NCHW input (native dtype).
    # qh_ref: (TH, TH) = kron(I_{TH/8}, Q);  qwt_ref: (TW, TW) = kron(I_{TW/8}, Q)^T.
    # o_ref : (1, 1, TH, TW) per-tile DCT coefficients (image_dct_result).
    # Channel -> luma reduction + cast on the VPU (hides under the DMA).
    # rgb_to_ycbcr Y channel: ((R*255)*0.299 + (G*255)*0.587 + (B*255)*0.114)/255
    # == plain weighted sum of the raw input range (no level shift for Y).
    y = weights[0] * x_ref[0, 0].astype(jnp.float32)
    for c in range(1, len(weights)):
        y = y + weights[c] * x_ref[0, c].astype(jnp.float32)
    # MXU: kron(I,Q) @ Y @ kron(I,Q)^T == per-8x8-block Q @ blk @ Q^T.
    # f32 compute is required for the 1e-4 tolerance (coefficients are O(1-8)).
    tmp = jnp.dot(qh_ref[...], y, preferred_element_type=jnp.float32)
    o_ref[0, 0] = jnp.dot(tmp, qwt_ref[...], preferred_element_type=jnp.float32)


def blocked_dct_pallas(x: jax.Array, Q: np.ndarray, *,
                       th_target: int = 128, tw_target=None,
                       min_grid_steps: int = 8) -> jax.Array:
    """Returns image_dct_result with shape (B, 1, H, W), float32."""
    B, C, H, W = x.shape
    assert H % BLOCK == 0 and W % BLOCK == 0, "H, W must be multiples of 8"

    if tw_target is None:
        tw_target = _default_tw_target()

    # Channel-reduction weights (RGB -> Y, or take channel 0 verbatim, matching
    # the PyTorch module which uses only channel 0 whenever C != 3).
    if C == 3:
        weights = (0.299, 0.587, 0.114)
        c_blk = 3
    else:
        weights = (1.0,)
        c_blk = 1  # only channel 0 is ever read -> only DMA channel 0

    # Spatial tiles: multiples of 8 (sublane) / 128 (lane) dividing H / W,
    # capped at the generation's MXU width so kron waste stays off the
    # critical path on every TPU generation.
    TW = _pick_tile(W, 128, tw_target)
    TH = _pick_tile(H, BLOCK, th_target)

    # Guarantee enough grid steps for real double-buffering / megacore sharding
    # on small shapes (v7x: >=4 iterations per TensorCore).
    def _steps(th):
        return B * (H // th) * (W // TW)

    if _steps(TH) < min_grid_steps:
        for t in range(TH, BLOCK - 1, -BLOCK):
            if H % t == 0:
                TH = t
                if _steps(t) >= min_grid_steps:
                    break

    # Small per-tile block-diagonal Q operands (constant across the grid).
    QH = jnp.asarray(np.kron(np.eye(TH // BLOCK, dtype=np.float32), Q))      # (TH, TH)
    QWT = jnp.asarray(np.kron(np.eye(TW // BLOCK, dtype=np.float32), Q).T)   # (TW, TW)

    grid = (B, H // TH, W // TW)

    itemsize = jnp.dtype(x.dtype).itemsize
    # double-buffered input + output tiles + (double-buffered) Q operands
    resident = (2 * c_blk * TH * TW * itemsize
                + 2 * TH * TW * 4
                + 2 * (TH * TH + TW * TW) * 4)
    vmem_limit = int(min(32 << 20, max(16 << 20, 4 * resident)))

    # Real cost so XLA schedules the custom call sensibly next to the glue ops.
    flops = 2 * B * H * W * (TH + TW) + 2 * B * c_blk * H * W
    bytes_accessed = (B * c_blk * H * W * itemsize + B * H * W * 4
                      + 4 * (TH * TH + TW * TW))

    return pl.pallas_call(
        functools.partial(_dct_kernel, weights=weights),
        out_shape=jax.ShapeDtypeStruct((B, 1, H, W), jnp.float32),
        grid=grid,
        in_specs=[
            pl.BlockSpec((1, c_blk, TH, TW), lambda bi, ti, tj: (bi, 0, ti, tj)),
            pl.BlockSpec((TH, TH), lambda bi, ti, tj: (0, 0)),
            pl.BlockSpec((TW, TW), lambda bi, ti, tj: (0, 0)),
        ],
        out_specs=pl.BlockSpec((1, 1, TH, TW), lambda bi, ti, tj: (bi, 0, ti, tj)),
        compiler_params=pltpu.CompilerParams(
            dimension_semantics=("parallel", "parallel", "parallel"),
            vmem_limit_bytes=vmem_limit),
        cost_estimate=pl.CostEstimate(flops=flops, transcendentals=0,
                                      bytes_accessed=bytes_accessed),
    )(x, QH, QWT)


def sampled_dct2_forward(x: jax.Array, seed: int = 0):
    """Pallas/JAX re-implementation of Sampled_DCT2.forward.

    Returns (image_dct_result (B,1,H,W), dct_coeff_sample (B,64,250)).
    """
    B, C, H, W = x.shape
    a, b = H // BLOCK, W // BLOCK
    total = BLOCK * BLOCK
    assert a * b >= TRUNCATE, "need (H/8)*(W/8) >= 250 for the sampling step"
    Q = make_dct_matrix(BLOCK)

    # --- hot path: per-8x8-block 2D DCT on the MXU inside the Pallas kernel.
    image_dct = blocked_dct_pallas(x, Q)  # (B, 1, H, W) float32

    # --- glue: random sub-sampling of 250 coefficients per (batch, zigzag pos).
    # TODO(synk): torch.manual_seed/torch.randperm RNG stream is not
    # reproducible in JAX; semantics (independent random permutation per
    # (i, j), truncated to 250) are preserved via jax.random.
    # (A per-row permutation of length a*b is exactly what
    #  jax.random.choice(replace=False) does internally; for very large a*b a
    #  Gumbel-top-k would cut the sort cost, but it is negligible here.)
    key = jax.random.PRNGKey(seed)
    keys = jax.random.split(key, B * total)
    perm_idx = jax.vmap(
        lambda k: jax.random.permutation(k, a * b)[:TRUNCATE])(keys)
    perm_idx = perm_idx.reshape(B, total, TRUNCATE)          # block index p = i*b + j

    # Zigzag (row, col) offsets inside an 8x8 block.
    zig = np.asarray(_ZIGZAG_LOC, dtype=np.int32)            # (64, 2)
    zig_m = jnp.asarray(zig[:, 0])[None, :, None]            # (1, 64, 1)
    zig_n = jnp.asarray(zig[:, 1])[None, :, None]            # (1, 64, 1)

    # The (B, 64, a*b) coefficient-distribution tensor is never materialized:
    # sample[i, k, t] = image_dct[i, 0, (p//b)*8 + m_k, (p%b)*8 + n_k].
    rows = (perm_idx // b) * BLOCK + zig_m                    # (B, 64, 250)
    cols = (perm_idx % b) * BLOCK + zig_n                     # (B, 64, 250)
    batch_idx = jnp.arange(B)[:, None, None]                  # (B, 1, 1)
    dct_coeff_sample = image_dct[:, 0][batch_idx, rows, cols]  # (B, 64, 250)

    return image_dct, dct_coeff_sample


def _reference_blocked_dct(x: np.ndarray, Q: np.ndarray) -> np.ndarray:
    """Pure-numpy reference of the per-block DCT (for a sanity check)."""
    B, C, H, W = x.shape
    if C == 3:
        y = 0.299 * x[:, 0] + 0.587 * x[:, 1] + 0.114 * x[:, 2]
    else:
        y = x[:, 0]
    out = np.zeros((B, 1, H, W), dtype=np.float32)
    for bi in range(B):
        for i in range(H // BLOCK):
            for j in range(W // BLOCK):
                blk = y[bi, i * BLOCK:(i + 1) * BLOCK, j * BLOCK:(j + 1) * BLOCK]
                out[bi, 0, i * BLOCK:(i + 1) * BLOCK,
                    j * BLOCK:(j + 1) * BLOCK] = Q @ blk @ Q.T
    return out


if __name__ == "__main__":
    # Smallest shapes consistent with the module: (H/8)*(W/8) must be >= 250
    # for the hard-coded 250-sample truncation, so H = W = 128 (a*b = 256).
    B, C, H, W = 2, 3, 128, 128
    key = jax.random.PRNGKey(0)
    x = jax.random.uniform(key, (B, C, H, W), dtype=jnp.float32)

    image_dct, dct_coeff_sample = sampled_dct2_forward(x, seed=0)
    image_dct = jax.block_until_ready(image_dct)
    dct_coeff_sample = jax.block_until_ready(dct_coeff_sample)

    assert image_dct.shape == (B, 1, H, W)
    assert dct_coeff_sample.shape == (B, BLOCK * BLOCK, TRUNCATE)

    ref = _reference_blocked_dct(np.asarray(x), make_dct_matrix(BLOCK))
    np.testing.assert_allclose(np.asarray(image_dct), ref, rtol=1e-4, atol=1e-4)

    # Sampling sanity: every sampled DC value (zigzag position 0 -> (0,0)) must
    # match one of the per-block DC coefficients of the same image.
    dc_ref = ref[:, 0, 0::BLOCK, 0::BLOCK].reshape(B, -1)
    dc_samp = np.asarray(dct_coeff_sample)[:, 0, :]
    for i in range(B):
        gap = np.abs(dc_samp[i][:, None] - dc_ref[i][None, :]).min(axis=1)
        assert float(gap.max()) < 1e-3, gap.max()

    print("KERNEL_OK")
</pallas_src>

<mosaic_0001>
module attributes {stable_mosaic.version = 11 : i64} {
  func.func @_dct_kernel(%arg0: i32, %arg1: i32, %arg2: i32, %arg3: memref<1x3x32x128xf32, #tpu.memory_space<vmem>>, %arg4: memref<32x32xf32, #tpu.memory_space<vmem>>, %arg5: memref<128x128xf32, #tpu.memory_space<vmem>>, %arg6: memref<1x1x32x128xf32, #tpu.memory_space<vmem>>) attributes {dimension_semantics = [#tpu.dimension_semantics<parallel>, #tpu.dimension_semantics<parallel>, #tpu.dimension_semantics<parallel>], iteration_bounds = array<i64: 2, 4, 1>, scalar_prefetch = 0 : i64, scratch_operands = 0 : i64, tpu.core_type = #tpu.core_type<tc>, window_params = [{transform_indices = @transform_0, window_bounds = array<i64: 1, 3, 32, 128>}, {pipeline_mode = #tpu.pipeline_mode<synchronous>, transform_indices = @transform_1, window_bounds = array<i64: 32, 32>}, {pipeline_mode = #tpu.pipeline_mode<synchronous>, transform_indices = @transform_2, window_bounds = array<i64: 128, 128>}, {transform_indices = @transform_3, window_bounds = array<i64: 1, 1, 32, 128>}]} {
    %c0 = arith.constant 0 : index
    %c0_0 = arith.constant 0 : index
    %c0_1 = arith.constant 0 : index
    %c0_2 = arith.constant 0 : index
    %0 = vector.load %arg3[%c0, %c0_0, %c0_1, %c0_2] : memref<1x3x32x128xf32, #tpu.memory_space<vmem>>, vector<1x1x32x128xf32>
    %1 = vector.shape_cast %0 : vector<1x1x32x128xf32> to vector<32x128xf32>
    %cst = arith.constant 2.990000e-01 : f32
    %2 = vector.broadcast %cst : f32 to vector<32x128xf32>
    %3 = arith.mulf %2, %1 : vector<32x128xf32>
    %c0_3 = arith.constant 0 : index
    %c1 = arith.constant 1 : index
    %c0_4 = arith.constant 0 : index
    %c0_5 = arith.constant 0 : index
    %4 = vector.load %arg3[%c0_3, %c1, %c0_4, %c0_5] : memref<1x3x32x128xf32, #tpu.memory_space<vmem>>, vector<1x1x32x128xf32>
    %5 = vector.shape_cast %4 : vector<1x1x32x128xf32> to vector<32x128xf32>
    %cst_6 = arith.constant 5.870000e-01 : f32
    %6 = vector.broadcast %cst_6 : f32 to vector<32x128xf32>
    %7 = arith.mulf %6, %5 : vector<32x128xf32>
    %8 = arith.addf %3, %7 : vector<32x128xf32>
    %c0_7 = arith.constant 0 : index
    %c2 = arith.constant 2 : index
    %c0_8 = arith.constant 0 : index
    %c0_9 = arith.constant 0 : index
    %9 = vector.load %arg3[%c0_7, %c2, %c0_8, %c0_9] : memref<1x3x32x128xf32, #tpu.memory_space<vmem>>, vector<1x1x32x128xf32>
    %10 = vector.shape_cast %9 : vector<1x1x32x128xf32> to vector<32x128xf32>
    %cst_10 = arith.constant 1.140000e-01 : f32
    %11 = vector.broadcast %cst_10 : f32 to vector<32x128xf32>
    %12 = arith.mulf %11, %10 : vector<32x128xf32>
    %13 = arith.addf %8, %12 : vector<32x128xf32>
    %c0_11 = arith.constant 0 : index
    %c0_12 = arith.constant 0 : index
    %14 = vector.load %arg4[%c0_11, %c0_12] : memref<32x32xf32, #tpu.memory_space<vmem>>, vector<32x32xf32>
    %cst_13 = arith.constant dense<0.000000e+00> : vector<32x128xf32>
    %15 = tpu.matmul %14, %13, %cst_13 {dimension_numbers = #tpu.dot_dimension_numbers<[1], [0], [0], [1], [0, 0, 1, 1], [], []>} : vector<32x32xf32>, vector<32x128xf32>, vector<32x128xf32> -> vector<32x128xf32>
    %c0_14 = arith.constant 0 : index
    %c0_15 = arith.constant 0 : index
    %16 = vector.load %arg5[%c0_14, %c0_15] : memref<128x128xf32, #tpu.memory_space<vmem>>, vector<128x128xf32>
    %cst_16 = arith.constant dense<0.000000e+00> : vector<32x128xf32>
    %17 = tpu.matmul %15, %16, %cst_16 {dimension_numbers = #tpu.dot_dimension_numbers<[1], [0], [0], [1], [0, 0, 1, 1], [], []>} : vector<32x128xf32>, vector<128x128xf32>, vector<32x128xf32> -> vector<32x128xf32>
    %c0_17 = arith.constant 0 : index
    %c0_18 = arith.constant 0 : index
    %c0_19 = arith.constant 0 : index
    %c0_20 = arith.constant 0 : index
    %18 = vector.load %arg6[%c0_17, %c0_18, %c0_19, %c0_20] : memref<1x1x32x128xf32, #tpu.memory_space<vmem>>, vector<1x1x32x128xf32>
    %19 = vector.shape_cast %18 : vector<1x1x32x128xf32> to vector<32x128xf32>
    %20 = vector.shape_cast %17 : vector<32x128xf32> to vector<1x1x32x128xf32>
    tpu.vector_store %arg6[%c0_17, %c0_18, %c0_19, %c0_20], %20 {strides = array<i32>} : memref<1x1x32x128xf32, #tpu.memory_space<vmem>>, vector<1x1x32x128xf32>,
    return
  }
  func.func @transform_0(%arg0: i32, %arg1: i32, %arg2: i32) -> (i32, i32, i32, i32) {
    %c0_i32 = arith.constant 0 : i32
    %c0_i32_0 = arith.constant 0 : i32
    return %arg0, %c0_i32, %arg1, %arg2 : i32, i32, i32, i32
  }
  func.func @transform_1(%arg0: i32, %arg1: i32, %arg2: i32) -> (i32, i32) {
    %c0_i32 = arith.constant 0 : i32
    %c0_i32_0 = arith.constant 0 : i32
    %c0_i32_1 = arith.constant 0 : i32
    return %c0_i32, %c0_i32_0 : i32, i32
  }
  func.func @transform_2(%arg0: i32, %arg1: i32, %arg2: i32) -> (i32, i32) {
    %c0_i32 = arith.constant 0 : i32
    %c0_i32_0 = arith.constant 0 : i32
    %c0_i32_1 = arith.constant 0 : i32
    return %c0_i32, %c0_i32_0 : i32, i32
  }
  func.func @transform_3(%arg0: i32, %arg1: i32, %arg2: i32) -> (i32, i32, i32, i32) {
    %c0_i32 = arith.constant 0 : i32
    %c0_i32_0 = arith.constant 0 : i32
    return %arg0, %c0_i32, %arg1, %arg2 : i32, i32, i32, i32
  }
}

</mosaic_0001>

<llo_original>
// kernel: tpu_custom_call.1
$region0: #{tpu_custom_call.1}
  #allocation0 [shape = 'u32[]', space=smem, size = 0x4, offset = 0x4, fixed_abs, tag = 'smem constant byte address 0x4 - core index']
  #allocation1 [shape = 'u32[72,128]{1,0:T(1,128)}', space=vmem, size = 0x9000, scoped, tag = 'internal scratch']
  #allocation9 [shape = 's32[]', space=sflag, size = 0x4, offset = 0, fixed_abs, tag = 'sflag constant byte address 0x0 - dummy sync flag']
  %s0 = inlined_call_operand.hbm [shape: f32[2,3,128,128], index: 0, kind: input, shape index: {}]
  %s1 = inlined_call_operand.hbm [shape: f32[32,32], index: 1, kind: input, shape index: {}]
  %s2 = inlined_call_operand.hbm [shape: f32[128,128], index: 2, kind: input, shape index: {}]
  %s3 = inlined_call_operand.hbm [shape: f32[2,1,128,128], index: 3, kind: output, shape index: {}]
  %s4 = sld [smem:[#allocation0]]
  $region57: #{tpu_custom_call.1} parent=0
    _
  %s6 = ssub.s32 1, %s4
  %s7 = scalar_select 0, %s6, %s4
  $region1: #{tpu_custom_call.1} parent=0
    #allocation2 [shape = 'u8[98304]{0}', space=vmem, size = 0x18000, scoped, tag = 'input window, operand 0']
    #allocation3 [shape = 's32[2]{0}', space=sflag, size = 0x8, scoped, tag = 'scoped memory for tpu_custom_call.1']
    #allocation4 [shape = 's32[2]{0}', space=sflag, size = 0x8, scoped, tag = 'scoped memory for tpu_custom_call.1']
    #allocation5 [shape = 'u8[16384]{0}', space=vmem, size = 0x4000, scoped, tag = 'input window, operand 1, single buffered']
    #allocation6 [shape = 's32[1]{0}', space=sflag, size = 0x4, scoped, tag = 'scoped memory for tpu_custom_call.1']
    #allocation7 [shape = 'u8[65536]{0}', space=vmem, size = 0x10000, scoped, tag = 'input window, operand 2, single buffered']
    #allocation8 [shape = 'u8[32768]{0}', space=vmem, size = 0x8000, scoped, tag = 'output window, operand 0']
    %8 = vsyncpa [#allocation3], 0
    %s9 = scalar_lea.sflag [#allocation3], 1
    %10 = vsyncpa %s9, 0
    %11 = vsyncpa [#allocation6], 0
    %12 = vsyncpa [#allocation4], 0
    %s13 = scalar_lea.sflag [#allocation4], 1
    %14 = vsyncpa %s13, 0
    loop: start=0, step=1, limit=10
    $region2: #{tpu_custom_call.1} parent=1 // loop_pre_header
      _
    $region3: #{tpu_custom_call.1} parent=1 // loop_header
      %s16 = sphi 0, %s20
      %p17 = scmp.ge.s32.totalorder %s16, 10
      %s23 = sphi 0, %s42
      %s24 = sphi 0, %s38
      %s25 = sphi 0, %s34
      %s26 = sphi 0, %s23
      %s27 = sphi 0, %s24
      %s28 = sphi 0, %s25
      %s29 = sphi 0, %s26
      %s30 = sphi 0, %s27
      %s31 = sphi 0, %s28
      %s49 = sphi 0, %s51
      %s52 = sphi 0, %s49
      %s53 = sphi 0, %s52
      %s69 = sphi 0, %s53
      %s73 = sphi 0, %s73
      %s75 = sphi 0, %s73
      %s76 = sphi 0, %s75
      %s90 = sphi 0, %s76
      %s94 = sphi 0, %s94
      %s96 = sphi 0, %s94
      %s97 = sphi 0, %s96
      %s111 = sphi 0, %s97
      %s121 = sphi 0, %s123
      %s124 = sphi 0, %s121
      %s125 = sphi 0, %s124
      %s141 = sphi 0, %s125
    $region4: #{tpu_custom_call.1} parent=1 // loop_header_branch
      %19 = sbr.rel (%p17) target = $region8
    $region5: #{tpu_custom_call.1} parent=1 // loop_body
      %s21 = ssub.s32 %s16, 1
      %s22 = ssub.s32 %s16, 2
      %s32 = sadd.s32 1, %s25
      %p33 = scmp.ge.s32.totalorder %s32, 1
      %s34 = scalar_select %p33, 0, %s32
      %s35 = sadd.s32 1, %s24
      %s36 = scalar_select %p33, %s35, %s24
      %p37 = scmp.ge.s32.totalorder %s36, 4
      %s38 = scalar_select %p37, 0, %s36
      %s39 = sadd.s32 1, %s23
      %s40 = scalar_select %p37, %s39, %s23
      %p41 = scmp.ge.s32.totalorder %s40, 2
      %s42 = scalar_select %p41, 0, %s40
      %s43 = ssub.s32 %s23, %s42
      %s44 = ssub.s32 %s24, %s38
      %s45 = sor.u32 %s43, %s44
      %s46 = ssub.s32 %s25, %s34
      %s47 = sor.u32 %s45, %s46
      %p48 = scmp.eq.s32.totalorder %s47, 0
      %s50 = sadd.s32 %s49, 1
      %s51 = scalar_select %p48, %s49, %s50
      %p54 = pneg %p48
      %p55 = scmp.eq.s32.totalorder %s16, 7
      %p56 = por %p54, %p55
      %p57 = scmp.ne.s32.totalorder %s49, %s52
      %p58 = scmp.eq.s32.totalorder %s16, 0
      %p59 = por %p57, %p58
      %p60 = scmp.ne.s32.totalorder %s49, %s52
      %p61 = scmp.eq.s32.totalorder %s21, 7
      %p62 = por %p60, %p61
      %p63 = scmp.ne.s32.totalorder %s52, %s53
      %p64 = scmp.eq.s32.totalorder %s21, 0
      %p65 = por %p63, %p64
      %p66 = scmp.ne.s32.totalorder %s52, %s53
      %p67 = scmp.eq.s32.totalorder %s22, 7
      %p68 = por %p66, %p67
      %p70 = scmp.ne.s32.totalorder %s53, %s69
      %p71 = scmp.eq.s32.totalorder %s22, 0
      %p72 = por %p70, %p71
      %s74 = sadd.s32 %s73, 1
      %p77 = scmp.eq.s32.totalorder %s16, 7
      %p78 = scmp.ne.s32.totalorder %s73, %s75
      %p79 = scmp.eq.s32.totalorder %s16, 0
      %p80 = por %p78, %p79
      %p81 = scmp.ne.s32.totalorder %s73, %s75
      %p82 = scmp.eq.s32.totalorder %s21, 7
      %p83 = por %p81, %p82
      %p84 = scmp.ne.s32.totalorder %s75, %s76
      %p85 = scmp.eq.s32.totalorder %s21, 0
      %p86 = por %p84, %p85
      %p87 = scmp.ne.s32.totalorder %s75, %s76
      %p88 = scmp.eq.s32.totalorder %s22, 7
      %p89 = por %p87, %p88
      %p91 = scmp.ne.s32.totalorder %s76, %s90
      %p92 = scmp.eq.s32.totalorder %s22, 0
      %p93 = por %p91, %p92
      %s95 = sadd.s32 %s94, 1
      %p98 = scmp.eq.s32.totalorder %s16, 7
      %p99 = scmp.ne.s32.totalorder %s94, %s96
      %p100 = scmp.eq.s32.totalorder %s16, 0
      %p101 = por %p99, %p100
      %p102 = scmp.ne.s32.totalorder %s94, %s96
      %p103 = scmp.eq.s32.totalorder %s21, 7
      %p104 = por %p102, %p103
      %p105 = scmp.ne.s32.totalorder %s96, %s97
      %p106 = scmp.eq.s32.totalorder %s21, 0
      %p107 = por %p105, %p106
      %p108 = scmp.ne.s32.totalorder %s96, %s97
      %p109 = scmp.eq.s32.totalorder %s22, 7
      %p110 = por %p108, %p109
      %p112 = scmp.ne.s32.totalorder %s97, %s111
      %p113 = scmp.eq.s32.totalorder %s22, 0
      %p114 = por %p112, %p113
      %s115 = ssub.s32 %s23, %s42
      %s116 = ssub.s32 %s24, %s38
      %s117 = sor.u32 %s115, %s116
      %s118 = ssub.s32 %s25, %s34
      %s119 = sor.u32 %s117, %s118
      %p120 = scmp.eq.s32.totalorder %s119, 0
      %s122 = sadd.s32 %s121, 1
      %s123 = scalar_select %p120, %s121, %s122
      %p126 = pneg %p120
      %p127 = scmp.eq.s32.totalorder %s16, 7
      %p128 = por %p126, %p127
      %p129 = scmp.ne.s32.totalorder %s121, %s124
      %p130 = scmp.eq.s32.totalorder %s16, 0
      %p131 = por %p129, %p130
      %p132 = scmp.ne.s32.totalorder %s121, %s124
      %p133 = scmp.eq.s32.totalorder %s21, 7
      %p134 = por %p132, %p133
      %p135 = scmp.ne.s32.totalorder %s124, %s125
      %p136 = scmp.eq.s32.totalorder %s21, 0
      %p137 = por %p135, %p136
      %p138 = scmp.ne.s32.totalorder %s124, %s125
      %p139 = scmp.eq.s32.totalorder %s22, 7
      %p140 = por %p138, %p139
      %p142 = scmp.ne.s32.totalorder %s125, %s141
      %p143 = scmp.eq.s32.totalorder %s22, 0
      %p144 = por %p142, %p143
      %p145 = scmp.le.s32.totalorder 1, %s16
      %p146 = scmp.lt.s32.totalorder %s16, 9
      %p147 = pnand %p145, %p146
      %p148 = pneg %p147
      // Predicated region
      $region9: #{tpu_custom_call.1} parent=5 // pred_check
        _
      $region10: #{tpu_custom_call.1} parent=5 // pred_check_branch
        %150 = sbr.rel (%p147) target = $region12
      $region11: #{tpu_custom_call.1} parent=5 // pred_region
        %s151 = ssub.s32 %s16, 1
        // Predicated region
        $region13: #{tpu_custom_call.1} parent=11 // pred_check
          %p152 = pneg %p86
        $region14: #{tpu_custom_call.1} parent=11 // pred_check_branch
          %154 = sbr.rel (%p152) target = $region16
        $region15: #{tpu_custom_call.1} parent=11 // pred_region
          %156 = vsyncadd [#allocation6], 0
          %s157 = sshll.u32 %s1, 4
          %s158 = int_to_ptr.hbm [resolvable:$true] %s157
          %s159 = sshll.u32 [#allocation5], 4
          %s160 = int_to_ptr.vmem [resolvable:$true] %s159
          %165 = dma.hbm_to_vmem [thread:$0]  %s158, 512, %s160, [#allocation6], 128, 128, 8
        $region16: #{tpu_custom_call.1} parent=11 // pred_fallthru
          _
        // Predicated region
        $region17: #{tpu_custom_call.1} parent=11 // pred_check
          %p166 = pneg %p107
        $region18: #{tpu_custom_call.1} parent=11 // pred_check_branch
          %168 = sbr.rel (%p166) target = $region20
        $region19: #{tpu_custom_call.1} parent=11 // pred_region
          %170 = vsyncadd [#allocation6], 0
          %s171 = sshll.u32 %s2, 4
          %s172 = int_to_ptr.hbm [resolvable:$true] %s171
          %s173 = sshll.u32 [#allocation7], 4
          %s174 = int_to_ptr.vmem [resolvable:$true] %s173
          %179 = dma.hbm_to_vmem [thread:$0]  %s172, 2048, %s174, [#allocation6], 128, 128, 8
        $region20: #{tpu_custom_call.1} parent=11 // pred_fallthru
          _
      $region12: #{tpu_custom_call.1} parent=5 // pred_fallthru
        _
      %p180 = scmp.lt.s32.totalorder %s16, 8
      // Predicated region
      $region21: #{tpu_custom_call.1} parent=5 // pred_check
        %p181 = pneg %p180
      $region22: #{tpu_custom_call.1} parent=5 // pred_check_branch
        %183 = sbr.rel (%p181) target = $region24
      $region23: #{tpu_custom_call.1} parent=5 // pred_region
        // Predicated region
        $region25: #{tpu_custom_call.1} parent=23 // pred_check
          %p184 = pneg %p59
        $region26: #{tpu_custom_call.1} parent=23 // pred_check_branch
          %186 = sbr.rel (%p184) target = $region28
        $region27: #{tpu_custom_call.1} parent=23 // pred_region
          #allocation10 [shape = 'u32[6]{0}', space=smem, size = 0x18, scoped, tag = 'DMA stride descriptor']
          %s187 = sand.u32 %s49, 1
          %s188 = scalar_lea.sflag [#allocation3], %s187
          %s189 = sand.u32 %s49, 1
          %s190 = smul.addr %s189, 96
          %s191 = scalar_lea.vmem [#allocation2], %s190
          %s192 = smul.u32 4, %s24
          %194 = vsyncadd %s188, 0
          %s195 = sadd.s32 %s25, %s192
          %s196 = smul.addr %s23, 48
          %s197 = sadd.s32 %s195, %s196
          %s198 = smul.addr %s197, 8
          %s199 = scalar_lea.hbm %s0, %s198
          %s201 = sshll.u32 1, 14
          %s202 = sxor.u32 4294967295, %s201
          %s204 = sld [smem:[#allocation0]]
          %s205 = sadd.s32 2, %s204
          %s207 = sshll.u32 7, 26
          %s208 = sxor.u32 4294967295, %s207
          %s209 = sand.u32 0, %s208
          %s210 = sshll.u32 %s205, 26
          %s211 = sor.u32 %s209, %s210
          %s212 = sshll.u32 %s199, 4
          %s213 = int_to_ptr.hbm [resolvable:$true] %s212
          %s214 = sshll.u32 %s191, 4
          %s215 = int_to_ptr.vmem [resolvable:$true] %s214
          %221 = sst [smem:[#allocation10]] 2048
          %s222 = scalar_lea.smem [#allocation10], 1
          %223 = sst [smem:[%s222]] 512
          %s224 = scalar_lea.smem [#allocation10], 2
          %225 = sst [smem:[%s224]] 4
          %s226 = scalar_lea.smem [#allocation10], 3
          %227 = sst [smem:[%s226]] 128
          %s228 = scalar_lea.smem [#allocation10], 4
          %229 = sst [smem:[%s228]] 128
          %s230 = scalar_lea.smem [#allocation10], 5
          %231 = sst [smem:[%s230]] 8
          %233 = dma.general %s213, 1536, %s215, %s188, [#allocation9], [#allocation10], %s211, 0
        $region28: #{tpu_custom_call.1} parent=23 // pred_fallthru
          _
      $region24: #{tpu_custom_call.1} parent=5 // pred_fallthru
        _
      %p234 = scmp.le.s32.totalorder 1, %s16
      %p235 = scmp.lt.s32.totalorder %s16, 9
      %p236 = pnand %p234, %p235
      %p237 = pneg %p236
      // Predicated region
      $region29: #{tpu_custom_call.1} parent=5 // pred_check
        _
      $region30: #{tpu_custom_call.1} parent=5 // pred_check_branch
        %239 = sbr.rel (%p236) target = $region32
      $region31: #{tpu_custom_call.1} parent=5 // pred_region
        %s240 = ssub.s32 %s16, 1
        %s241 = sand.u32 %s52, 1
        %s242 = scalar_lea.sflag [#allocation3], %s241
        %s243 = sand.u32 %s52, 1
        %s244 = smul.addr %s243, 96
        %s245 = scalar_lea.vmem [#allocation2], %s244
        // Predicated region
        $region33: #{tpu_custom_call.1} parent=31 // pred_check
          %p246 = pneg %p65
        $region34: #{tpu_custom_call.1} parent=31 // pred_check_branch
          %248 = sbr.rel (%p246) target = $region36
        $region35: #{tpu_custom_call.1} parent=31 // pred_region
          %250 = dma.done %s242, 1536
        $region36: #{tpu_custom_call.1} parent=31 // pred_fallthru
          _
        // Predicated region
        $region37: #{tpu_custom_call.1} parent=31 // pred_check
          %p251 = pneg %p86
        $region38: #{tpu_custom_call.1} parent=31 // pred_check_branch
          %253 = sbr.rel (%p251) target = $region40
        $region39: #{tpu_custom_call.1} parent=31 // pred_region
          %255 = dma.done [#allocation6], 512
        $region40: #{tpu_custom_call.1} parent=31 // pred_fallthru
          _
        // Predicated region
        $region41: #{tpu_custom_call.1} parent=31 // pred_check
          %p256 = pneg %p107
        $region42: #{tpu_custom_call.1} parent=31 // pred_check_branch
          %258 = sbr.rel (%p256) target = $region44
        $region43: #{tpu_custom_call.1} parent=31 // pred_region
          %260 = dma.done [#allocation6], 2048
        $region44: #{tpu_custom_call.1} parent=31 // pred_fallthru
          _
        %s261 = sand.u32 %s52, 1
        %s262 = scalar_lea.sflag [#allocation3], %s261
        %s263 = sand.u32 %s52, 1
        %s264 = smul.addr %s263, 96
        %s265 = scalar_lea.vmem [#allocation2], %s264
        %p266 = pneg %p65
        %p267 = pneg %p62
        %p268 = pneg %p86
        %p269 = pneg %p83
        %p270 = pneg %p107
        %p271 = pneg %p104
        %p272 = pneg %p137
        %p273 = pneg %p134
        %s274 = sand.u32 %s124, 1
        %s275 = scalar_lea.sflag [#allocation4], %s274
        %s276 = sand.u32 %s124, 1
        %s277 = smul.addr %s276, 32
        %s278 = scalar_lea.vmem [#allocation8], %s277
        %s279 = smul.u32 4, %s27
        %s280 = smul.u32 4, %s27
        %v281 = vld [vmem:[%s245] sm:$0xff]
        %v282 = vld [vmem:[%s245 + $0x8] sm:$0xff]
        %v283 = vld [vmem:[%s245 + $0x10] sm:$0xff]
        %v284 = vld [vmem:[%s245 + $0x18] sm:$0xff]
        %v285 = vmul.f32 %v281, 0.299
        %v286 = vmul.f32 %v282, 0.299
        %v287 = vmul.f32 %v283, 0.299
        %v288 = vmul.f32 %v284, 0.299
        %s289 = scalar_lea.vmem %s245, 32 [#allocation2]
        %v290 = vld [vmem:[%s289] sm:$0xff]
        %v291 = vld [vmem:[%s289 + $0x8] sm:$0xff]
        %v292 = vld [vmem:[%s289 + $0x10] sm:$0xff]
        %v293 = vld [vmem:[%s289 + $0x18] sm:$0xff]
        %v294 = vmul.f32 %v290, 0.587
        %v295 = vmul.f32 %v291, 0.587
        %v296 = vmul.f32 %v292, 0.587
        %v297 = vmul.f32 %v293, 0.587
        %v298 = vadd.f32 %v285, %v294
        %v299 = vadd.f32 %v286, %v295
        %v300 = vadd.f32 %v287, %v296
        %v301 = vadd.f32 %v288, %v297
        %s302 = scalar_lea.vmem %s245, 64 [#allocation2]
        %v303 = vld [vmem:[%s302] sm:$0xff]
        %v304 = vld [vmem:[%s302 + $0x8] sm:$0xff]
        %v305 = vld [vmem:[%s302 + $0x10] sm:$0xff]
        %v306 = vld [vmem:[%s302 + $0x18] sm:$0xff]
        %v307 = vmul.f32 %v303, 0.114
        %v308 = vmul.f32 %v304, 0.114
        %v309 = vmul.f32 %v305, 0.114
        %v310 = vmul.f32 %v306, 0.114
        %v311 = vadd.f32 %v298, %v307
        %v312 = vadd.f32 %v299, %v308
        %v313 = vadd.f32 %v300, %v309
        %v314 = vadd.f32 %v301, %v310
        %v315 = vld [vmem:[#allocation5] sm:$0xff]
        %v316 = vld [vmem:[#allocation5 + $0x8] sm:$0xff]
        %v317 = vld [vmem:[#allocation5 + $0x10] sm:$0xff]
        %v318 = vld [vmem:[#allocation5 + $0x18] sm:$0xff]
        %vm319 = vcmask 261120
        %v321 = vsel %vm319, %v315, 0
        %v324 = vsel %vm319, %v316, 0
        %v327 = vsel %vm319, %v317, 0
        %v330 = vsel %vm319, %v318, 0
        %332 = vmatpush.msra.mxu0 0.0
        %333 = vmatpush.msra.mxu0 0.0
        %334 = vmatpush.msra.mxu0 0.0
        %335 = vmatpush.msra.mxu0 0.0
        %336 = vmatpush.msra.mxu0 0.0
        %337 = vmatpush.msra.mxu0 0.0
        %338 = vmatpush.msra.mxu0 0.0
        %339 = vmatpush.msra.mxu0 0.0
        %340 = vmatpush.msra.mxu0 0.0
        %341 = vmatpush.msra.mxu0 0.0
        %342 = vmatpush.msra.mxu0 0.0
        %343 = vmatpush.msra.mxu0 0.0
        %344 = vmatpush.msra.mxu0 %v314
        %345 = vmatpush.msra.mxu0 %v313
        %346 = vmatpush.msra.mxu0 %v312
        %347 = vmatpush.msra.mxu0 %v311
        %348 = vmatmul.f32.gmra.mxu0 %v321
        %v349 = vpop.f32.mrf.mxu0
        %v350 = vadd.f32 0.0, %v349
        %351 = vmatmul.f32.gmra.mxu0 %v324
        %v352 = vpop.f32.mrf.mxu0
        %v353 = vadd.f32 0.0, %v352
        %354 = vmatmul.f32.gmra.mxu0 %v327
        %v355 = vpop.f32.mrf.mxu0
        %v356 = vadd.f32 0.0, %v355
        %357 = vmatmul.f32.gmra.mxu0 %v330
        %v358 = vpop.f32.mrf.mxu0
        %v359 = vadd.f32 0.0, %v358
        %360 = vdwg.mxu0
        %v361 = vld [vmem:[#allocation7] sm:$0xff]
        %v362 = vld [vmem:[#allocation7 + $0x8] sm:$0xff]
        %v363 = vld [vmem:[#allocation7 + $0x10] sm:$0xff]
        %v364 = vld [vmem:[#allocation7 + $0x18] sm:$0xff]
        %v365 = vld [vmem:[#allocation7 + $0x20] sm:$0xff]
        %v366 = vld [vmem:[#allocation7 + $0x28] sm:$0xff]
        %v367 = vld [vmem:[#allocation7 + $0x30] sm:$0xff]
        %v368 = vld [vmem:[#allocation7 + $0x38] sm:$0xff]
        %v369 = vld [vmem:[#allocation7 + $0x40] sm:$0xff]
        %v370 = vld [vmem:[#allocation7 + $0x48] sm:$0xff]
        %v371 = vld [vmem:[#allocation7 + $0x50] sm:$0xff]
        %v372 = vld [vmem:[#allocation7 + $0x58] sm:$0xff]
        %v373 = vld [vmem:[#allocation7 + $0x60] sm:$0xff]
        %v374 = vld [vmem:[#allocation7 + $0x68] sm:$0xff]
        %v375 = vld [vmem:[#allocation7 + $0x70] sm:$0xff]
        %v376 = vld [vmem:[#allocation7 + $0x78] sm:$0xff]
        %377 = vmatpush.msra.mxu0 %v376
        %378 = vmatpush.msra.mxu0 %v375
        %379 = vmatpush.msra.mxu0 %v374
        %380 = vmatpush.msra.mxu0 %v373
        %381 = vmatpush.msra.mxu0 %v372
        %382 = vmatpush.msra.mxu0 %v371
        %383 = vmatpush.msra.mxu0 %v370
        %384 = vmatpush.msra.mxu0 %v369
        %385 = vmatpush.msra.mxu0 %v368
        %386 = vmatpush.msra.mxu0 %v367
        %387 = vmatpush.msra.mxu0 %v366
        %388 = vmatpush.msra.mxu0 %v365
        %389 = vmatpush.msra.mxu0 %v364
        %390 = vmatpush.msra.mxu0 %v363
        %391 = vmatpush.msra.mxu0 %v362
        %392 = vmatpush.msra.mxu0 %v361
        %393 = vmatmul.f32.gmra.mxu0 %v350
        %v394 = vpop.f32.mrf.mxu0
        %v395 = vadd.f32 0.0, %v394
        %396 = vmatmul.f32.gmra.mxu0 %v353
        %v397 = vpop.f32.mrf.mxu0
        %v398 = vadd.f32 0.0, %v397
        %399 = vmatmul.f32.gmra.mxu0 %v356
        %v400 = vpop.f32.mrf.mxu0
        %v401 = vadd.f32 0.0, %v400
        %402 = vmatmul.f32.gmra.mxu0 %v359
        %v403 = vpop.f32.mrf.mxu0
        %v404 = vadd.f32 0.0, %v403
        %405 = vdwg.mxu0
        %406 = vst [vmem:[%s278] sm:$0xff] %v395
        %407 = vst [vmem:[%s278 + $0x8] sm:$0xff] %v398
        %408 = vst [vmem:[%s278 + $0x10] sm:$0xff] %v401
        %409 = vst [vmem:[%s278 + $0x18] sm:$0xff] %v404
        %s410 = sand.u32 %s124, 1
        %s411 = scalar_lea.sflag [#allocation4], %s410
        %s412 = sand.u32 %s124, 1
        %s413 = smul.addr %s412, 32
        %s414 = scalar_lea.vmem [#allocation8], %s413
        // Predicated region
        $region45: #{tpu_custom_call.1} parent=31 // pred_check
          %p415 = pneg %p134
        $region46: #{tpu_custom_call.1} parent=31 // pred_check_branch
          %417 = sbr.rel (%p415) target = $region48
        $region47: #{tpu_custom_call.1} parent=31 // pred_region
          %s418 = smul.u32 4, %s27
          %420 = vsyncadd %s411, 0
          %s421 = sadd.s32 %s28, %s418
          %s422 = smul.addr %s26, 16
          %s423 = sadd.s32 %s421, %s422
          %s424 = smul.addr %s423, 8
          %s425 = scalar_lea.hbm %s3, %s424
          %s426 = sshll.u32 %s414, 4
          %s427 = int_to_ptr.vmem [resolvable:$true] %s426
          %s428 = sshll.u32 %s425, 4
          %s429 = int_to_ptr.hbm [resolvable:$true] %s428
          %434 = dma.vmem_to_hbm [thread:$0]  %s427, 512, %s429, %s411, 128, 128, 8
        $region48: #{tpu_custom_call.1} parent=31 // pred_fallthru
          _
      $region32: #{tpu_custom_call.1} parent=5 // pred_fallthru
        _
      %p435 = scmp.le.s32.totalorder 2, %s16
      // Predicated region
      $region49: #{tpu_custom_call.1} parent=5 // pred_check
        %p436 = pneg %p435
      $region50: #{tpu_custom_call.1} parent=5 // pred_check_branch
        %438 = sbr.rel (%p436) target = $region52
      $region51: #{tpu_custom_call.1} parent=5 // pred_region
        %s439 = ssub.s32 %s16, 2
        // Predicated region
        $region53: #{tpu_custom_call.1} parent=51 // pred_check
          %p440 = pneg %p140
        $region54: #{tpu_custom_call.1} parent=51 // pred_check_branch
          %442 = sbr.rel (%p440) target = $region56
        $region55: #{tpu_custom_call.1} parent=51 // pred_region
          %s443 = sand.u32 %s125, 1
          %s444 = scalar_lea.sflag [#allocation4], %s443
          %s445 = sand.u32 %s125, 1
          %s446 = smul.addr %s445, 32
          %s447 = scalar_lea.vmem [#allocation8], %s446
          %449 = dma.done %s444, 512
        $region56: #{tpu_custom_call.1} parent=51 // pred_fallthru
          _
      $region52: #{tpu_custom_call.1} parent=5 // pred_fallthru
        _
    $region6: #{tpu_custom_call.1} parent=1 // loop_footer
      %s20 = sadd.s32 1, %s16
    $region7: #{tpu_custom_call.1} parent=1 // loop_footer_branch
      %15 = sbr.rel target = $region3
    $region8: #{tpu_custom_call.1} parent=1 // loop_exit
      _
    %450 = vsyncpa [#allocation3], 1
    %s451 = scalar_lea.sflag [#allocation3], 1
    %452 = vsyncpa %s451, 1
    %453 = vsyncpa [#allocation6], 1
    %454 = vsyncpa [#allocation4], 1
    %s455 = scalar_lea.sflag [#allocation4], 1
    %456 = vsyncpa %s455, 1

</llo_original>
